<compile_context>
chip_gen: v5e
topology: v5e:2x2
jax: 0.10.0
libtpu: 0.0.40
codegen_flags: <defaults>
</compile_context>

<pallas_src>
import jax
import jax.numpy as jnp
from jax.experimental import pallas as pl
from jax.experimental.pallas import tpu as pltpu


def _round_up(n, m):
    return ((n + m - 1) // m) * m


def _cdiv(a, b):
    return (a + b - 1) // b


def _mlp_kernel(x_ref,
                w1_ref, b1_ref,
                w2_ref, b2_ref,
                w3_ref, b3_ref,
                w4_ref, b4_ref,
                o_ref):
    """Fused 4-layer MLP, transposed layout (features on sublanes, batch on lanes).

    x_ref : (2, Bt)   f32
    wN_ref: (out, in) f32
    bN_ref: (out, 1)  f32
    o_ref : (1, Bt)   f32
    """
    x = x_ref[...]                                     # (2, Bt) f32

    # ---- Layer 1 (K=2): two VPU FMAs, skip the MXU entirely. ----
    w1 = w1_ref[...]                                   # (nc, 2) f32
    h = (w1[:, 0:1] * x[0:1, :]
         + w1[:, 1:2] * x[1:2, :]
         + b1_ref[...])                                # (nc, Bt) f32
    h = jnp.maximum(h, 0.0)

    # ---- Layers 2-3: f32 operands on the MXU, f32 accumulation. ----
    h = jnp.dot(w2_ref[...], h,
                preferred_element_type=jnp.float32) + b2_ref[...]
    h = jnp.maximum(h, 0.0)

    h = jnp.dot(w3_ref[...], h,
                preferred_element_type=jnp.float32) + b3_ref[...]
    h = jnp.maximum(h, 0.0)

    # ---- Layer 4 + sigmoid (exp on the EUP; exact divide keeps D <= 1). ----
    z = jnp.dot(w4_ref[...], h,
                preferred_element_type=jnp.float32) + b4_ref[...]   # (1, Bt)
    o_ref[...] = (1.0 / (1.0 + jnp.exp(-z))).astype(o_ref.dtype)


@jax.jit
def gaussian_discriminator(x, w1, b1, w2, b2, w3, b3, w4, b4):
    """x: (B, 2); weights stored as (in, out), biases as (1, out) (PyTorch-like).

    Internally flips to a batch-on-lanes layout, tiles the batch with a 1-D
    grid (weights resident via constant index_maps), and transposes back.
    """
    B = x.shape[0]
    nc = w1.shape[1]

    # --- Adaptive batch tiling (amortize per-step overhead, minimize pad,
    #     even >=2 tiles when B is large so both v7x TensorCores get work). ---
    tile_target = 16384
    n_tiles = max(1, _cdiv(B, tile_target))
    if B >= 256:                      # enough work to split across 2 cores
        n_tiles = max(n_tiles, 2)
        if n_tiles % 2:
            n_tiles += 1
    b_tile = _round_up(_cdiv(B, n_tiles), 128)
    b_pad = n_tiles * b_tile

    # Lane-dense transposed input (zero padded lanes compute throwaway values
    # but stay finite: sigmoid of a finite bias chain).
    # TODO(synk): if the producer can emit samples already as (2, B), skip this
    # relayout pass (it moves more HBM bytes than the kernel itself).
    x_t = jnp.pad(x.T, ((0, 0), (0, b_pad - B)))               # (2, b_pad)

    # Pre-transpose params to (out, in) / (out, 1); all f32.
    w1_t, w2_t, w3_t, w4_t = w1.T, w2.T, w3.T, w4.T            # (out, in)
    b1_t, b2_t, b3_t, b4_t = b1.T, b2.T, b3.T, b4.T            # (out, 1)

    const = lambda i: (0, 0)  # weights/biases: DMA'd once, stay resident

    # ~4288 FLOP / sample, ~12 B / sample of HBM traffic, 1 exp / sample.
    param_bytes = 4 * (nc * 2 + nc * nc * 2 + nc + 4 * nc + 1)
    cost = pl.CostEstimate(
        flops=4 * nc * (nc + 1) * b_pad + (4 * nc + 4) * b_pad,
        transcendentals=b_pad,
        bytes_accessed=12 * b_pad + param_bytes,
    )

    out_t = pl.pallas_call(
        _mlp_kernel,
        out_shape=jax.ShapeDtypeStruct((1, b_pad), x.dtype),
        grid=(n_tiles,),
        in_specs=[
            pl.BlockSpec((2, b_tile), lambda i: (0, i)),       # x tile
            pl.BlockSpec((nc, 2), const),                      # w1^T
            pl.BlockSpec((nc, 1), const),                      # b1
            pl.BlockSpec((nc, nc), const),                     # w2^T
            pl.BlockSpec((nc, 1), const),                      # b2
            pl.BlockSpec((nc, nc), const),                     # w3^T
            pl.BlockSpec((nc, 1), const),                      # b3
            pl.BlockSpec((1, nc), const),                      # w4^T
            pl.BlockSpec((1, 1), const),                       # b4
        ],
        out_specs=pl.BlockSpec((1, b_tile), lambda i: (0, i)),
        compiler_params=pltpu.CompilerParams(
            dimension_semantics=("parallel",),                 # megacore on v7x
            vmem_limit_bytes=48 << 20,                         # fits v5e..v7x
        ),
        cost_estimate=cost,
    )(x_t, w1_t, b1_t, w2_t, b2_t, w3_t, b3_t, w4_t, b4_t)

    return out_t[:, :B].T                                      # (B, 1)


def init_params(key, nc):
    """PyTorch nn.Linear default init: U(-1/sqrt(fan_in), 1/sqrt(fan_in)).
    Weights stored as (in, out); biases as (1, out)."""
    dims = [(2, nc), (nc, nc), (nc, nc), (nc, 1)]
    params = []
    for (fan_in, fan_out) in dims:
        key, kw, kb = jax.random.split(key, 3)
        bound = 1.0 / jnp.sqrt(float(fan_in))
        w = jax.random.uniform(kw, (fan_in, fan_out), jnp.float32, -bound, bound)
        b = jax.random.uniform(kb, (1, fan_out), jnp.float32, -bound, bound)
        params += [w, b]
    return params


def reference_forward(x, w1, b1, w2, b2, w3, b3, w4, b4):
    h = jnp.maximum(x @ w1 + b1, 0.0)
    h = jnp.maximum(h @ w2 + b2, 0.0)
    h = jnp.maximum(h @ w3 + b3, 0.0)
    return jax.nn.sigmoid(h @ w4 + b4)


if __name__ == "__main__":
    nc = 32       # hidden width of the discriminator
    B = 8         # batch of 2-D "Gaussian" samples

    key = jax.random.PRNGKey(0)
    key, kx = jax.random.split(key)
    x = jax.random.normal(kx, (B, 2), jnp.float32)

    params = init_params(key, nc)

    out = gaussian_discriminator(x, *params)
    out = jax.block_until_ready(out)
    ref = reference_forward(x, *params)
    assert out.shape == (B, 1), out.shape
    assert jnp.allclose(out, ref, atol=5e-3, rtol=5e-3), (out, ref)

    # Exercise the multi-tile grid path (non-divisible batch, 2 grid steps).
    key, kx2 = jax.random.split(key)
    x_big = jax.random.normal(kx2, (1000, 2), jnp.float32)
    out_big = jax.block_until_ready(gaussian_discriminator(x_big, *params))
    ref_big = reference_forward(x_big, *params)
    assert out_big.shape == (1000, 1), out_big.shape
    assert jnp.allclose(out_big, ref_big, atol=5e-3, rtol=5e-3)

    print("KERNEL_OK")
</pallas_src>

<mosaic_0001>
module attributes {stable_mosaic.version = 11 : i64} {
  func.func @_mlp_kernel(%arg0: i32, %arg1: memref<2x128xf32, #tpu.memory_space<vmem>>, %arg2: memref<32x2xf32, #tpu.memory_space<vmem>>, %arg3: memref<32x1xf32, #tpu.memory_space<vmem>>, %arg4: memref<32x32xf32, #tpu.memory_space<vmem>>, %arg5: memref<32x1xf32, #tpu.memory_space<vmem>>, %arg6: memref<32x32xf32, #tpu.memory_space<vmem>>, %arg7: memref<32x1xf32, #tpu.memory_space<vmem>>, %arg8: memref<1x32xf32, #tpu.memory_space<vmem>>, %arg9: memref<1x1xf32, #tpu.memory_space<vmem>>, %arg10: memref<1x128xf32, #tpu.memory_space<vmem>>) attributes {dimension_semantics = [#tpu.dimension_semantics<parallel>], iteration_bounds = array<i64: 1>, scalar_prefetch = 0 : i64, scratch_operands = 0 : i64, tpu.core_type = #tpu.core_type<tc>, window_params = [{transform_indices = @transform_0, window_bounds = array<i64: 2, 128>}, {pipeline_mode = #tpu.pipeline_mode<synchronous>, transform_indices = @transform_1, window_bounds = array<i64: 32, 2>}, {pipeline_mode = #tpu.pipeline_mode<synchronous>, transform_indices = @transform_2, window_bounds = array<i64: 32, 1>}, {pipeline_mode = #tpu.pipeline_mode<synchronous>, transform_indices = @transform_3, window_bounds = array<i64: 32, 32>}, {pipeline_mode = #tpu.pipeline_mode<synchronous>, transform_indices = @transform_4, window_bounds = array<i64: 32, 1>}, {pipeline_mode = #tpu.pipeline_mode<synchronous>, transform_indices = @transform_5, window_bounds = array<i64: 32, 32>}, {pipeline_mode = #tpu.pipeline_mode<synchronous>, transform_indices = @transform_6, window_bounds = array<i64: 32, 1>}, {pipeline_mode = #tpu.pipeline_mode<synchronous>, transform_indices = @transform_7, window_bounds = array<i64: 1, 32>}, {pipeline_mode = #tpu.pipeline_mode<synchronous>, transform_indices = @transform_8, window_bounds = array<i64: 1, 1>}, {transform_indices = @transform_9, window_bounds = array<i64: 1, 128>}]} {
    %c0 = arith.constant 0 : index
    %c0_0 = arith.constant 0 : index
    %0 = vector.load %arg1[%c0, %c0_0] : memref<2x128xf32, #tpu.memory_space<vmem>>, vector<2x128xf32>
    %c0_1 = arith.constant 0 : index
    %c0_2 = arith.constant 0 : index
    %1 = vector.load %arg2[%c0_1, %c0_2] : memref<32x2xf32, #tpu.memory_space<vmem>>, vector<32x2xf32>
    %2 = vector.extract_strided_slice %1 {offsets = [0, 0], sizes = [32, 1], strides = [1, 1]} : vector<32x2xf32> to vector<32x1xf32>
    %3 = vector.extract_strided_slice %0 {offsets = [0, 0], sizes = [1, 128], strides = [1, 1]} : vector<2x128xf32> to vector<1x128xf32>
    %4 = vector.broadcast %2 : vector<32x1xf32> to vector<32x128xf32>
    %5 = vector.broadcast %3 : vector<1x128xf32> to vector<32x128xf32>
    %6 = arith.mulf %4, %5 : vector<32x128xf32>
    %7 = vector.extract_strided_slice %1 {offsets = [0, 1], sizes = [32, 1], strides = [1, 1]} : vector<32x2xf32> to vector<32x1xf32>
    %8 = vector.extract_strided_slice %0 {offsets = [1, 0], sizes = [1, 128], strides = [1, 1]} : vector<2x128xf32> to vector<1x128xf32>
    %9 = vector.broadcast %7 : vector<32x1xf32> to vector<32x128xf32>
    %10 = vector.broadcast %8 : vector<1x128xf32> to vector<32x128xf32>
    %11 = arith.mulf %9, %10 : vector<32x128xf32>
    %12 = arith.addf %6, %11 : vector<32x128xf32>
    %c0_3 = arith.constant 0 : index
    %c0_4 = arith.constant 0 : index
    %13 = vector.load %arg3[%c0_3, %c0_4] : memref<32x1xf32, #tpu.memory_space<vmem>>, vector<32x1xf32>
    %14 = vector.broadcast %13 : vector<32x1xf32> to vector<32x128xf32>
    %15 = arith.addf %12, %14 : vector<32x128xf32>
    %cst = arith.constant 0.000000e+00 : f32
    %16 = vector.broadcast %cst : f32 to vector<32x128xf32>
    %17 = arith.maximumf %15, %16 : vector<32x128xf32>
    %c0_5 = arith.constant 0 : index
    %c0_6 = arith.constant 0 : index
    %18 = vector.load %arg4[%c0_5, %c0_6] : memref<32x32xf32, #tpu.memory_space<vmem>>, vector<32x32xf32>
    %cst_7 = arith.constant dense<0.000000e+00> : vector<32x128xf32>
    %19 = tpu.matmul %18, %17, %cst_7 {dimension_numbers = #tpu.dot_dimension_numbers<[1], [0], [0], [1], [0, 0, 1, 1], [], []>} : vector<32x32xf32>, vector<32x128xf32>, vector<32x128xf32> -> vector<32x128xf32>
    %c0_8 = arith.constant 0 : index
    %c0_9 = arith.constant 0 : index
    %20 = vector.load %arg5[%c0_8, %c0_9] : memref<32x1xf32, #tpu.memory_space<vmem>>, vector<32x1xf32>
    %21 = vector.broadcast %20 : vector<32x1xf32> to vector<32x128xf32>
    %22 = arith.addf %19, %21 : vector<32x128xf32>
    %cst_10 = arith.constant 0.000000e+00 : f32
    %23 = vector.broadcast %cst_10 : f32 to vector<32x128xf32>
    %24 = arith.maximumf %22, %23 : vector<32x128xf32>
    %c0_11 = arith.constant 0 : index
    %c0_12 = arith.constant 0 : index
    %25 = vector.load %arg6[%c0_11, %c0_12] : memref<32x32xf32, #tpu.memory_space<vmem>>, vector<32x32xf32>
    %cst_13 = arith.constant dense<0.000000e+00> : vector<32x128xf32>
    %26 = tpu.matmul %25, %24, %cst_13 {dimension_numbers = #tpu.dot_dimension_numbers<[1], [0], [0], [1], [0, 0, 1, 1], [], []>} : vector<32x32xf32>, vector<32x128xf32>, vector<32x128xf32> -> vector<32x128xf32>
    %c0_14 = arith.constant 0 : index
    %c0_15 = arith.constant 0 : index
    %27 = vector.load %arg7[%c0_14, %c0_15] : memref<32x1xf32, #tpu.memory_space<vmem>>, vector<32x1xf32>
    %28 = vector.broadcast %27 : vector<32x1xf32> to vector<32x128xf32>
    %29 = arith.addf %26, %28 : vector<32x128xf32>
    %cst_16 = arith.constant 0.000000e+00 : f32
    %30 = vector.broadcast %cst_16 : f32 to vector<32x128xf32>
    %31 = arith.maximumf %29, %30 : vector<32x128xf32>
    %c0_17 = arith.constant 0 : index
    %c0_18 = arith.constant 0 : index
    %32 = vector.load %arg8[%c0_17, %c0_18] : memref<1x32xf32, #tpu.memory_space<vmem>>, vector<1x32xf32>
    %cst_19 = arith.constant dense<0.000000e+00> : vector<1x128xf32>
    %33 = tpu.matmul %32, %31, %cst_19 {dimension_numbers = #tpu.dot_dimension_numbers<[1], [0], [0], [1], [0, 0, 1, 1], [], []>} : vector<1x32xf32>, vector<32x128xf32>, vector<1x128xf32> -> vector<1x128xf32>
    %c0_20 = arith.constant 0 : index
    %c0_21 = arith.constant 0 : index
    %34 = vector.load %arg9[%c0_20, %c0_21] : memref<1x1xf32, #tpu.memory_space<vmem>>, vector<1x1xf32>
    %35 = vector.broadcast %34 : vector<1x1xf32> to vector<1x128xf32>
    %36 = arith.addf %33, %35 : vector<1x128xf32>
    %cst_22 = arith.constant 0.000000e+00 : f32
    %37 = vector.broadcast %cst_22 : f32 to vector<1x128xf32>
    %38 = arith.subf %37, %36 : vector<1x128xf32>
    %39 = math.exp %38 : vector<1x128xf32>
    %cst_23 = arith.constant 1.000000e+00 : f32
    %40 = vector.broadcast %cst_23 : f32 to vector<1x128xf32>
    %41 = arith.addf %40, %39 : vector<1x128xf32>
    %cst_24 = arith.constant 1.000000e+00 : f32
    %42 = vector.broadcast %cst_24 : f32 to vector<1x128xf32>
    %43 = arith.divf %42, %41 : vector<1x128xf32>
    %c0_25 = arith.constant 0 : index
    %c0_26 = arith.constant 0 : index
    %44 = vector.load %arg10[%c0_25, %c0_26] : memref<1x128xf32, #tpu.memory_space<vmem>>, vector<1x128xf32>
    tpu.vector_store %arg10[%c0_25, %c0_26], %43 {strides = array<i32>} : memref<1x128xf32, #tpu.memory_space<vmem>>, vector<1x128xf32>,
    return
  }
  func.func @transform_0(%arg0: i32) -> (i32, i32) {
    %c0_i32 = arith.constant 0 : i32
    %c0_i32_0 = arith.constant 0 : i32
    return %c0_i32, %arg0 : i32, i32
  }
  func.func @transform_1(%arg0: i32) -> (i32, i32) {
    %c0_i32 = arith.constant 0 : i32
    %c0_i32_0 = arith.constant 0 : i32
    %c0_i32_1 = arith.constant 0 : i32
    return %c0_i32, %c0_i32_0 : i32, i32
  }
  func.func @transform_2(%arg0: i32) -> (i32, i32) {
    %c0_i32 = arith.constant 0 : i32
    %c0_i32_0 = arith.constant 0 : i32
    %c0_i32_1 = arith.constant 0 : i32
    return %c0_i32, %c0_i32_0 : i32, i32
  }
  func.func @transform_3(%arg0: i32) -> (i32, i32) {
    %c0_i32 = arith.constant 0 : i32
    %c0_i32_0 = arith.constant 0 : i32
    %c0_i32_1 = arith.constant 0 : i32
    return %c0_i32, %c0_i32_0 : i32, i32
  }
  func.func @transform_4(%arg0: i32) -> (i32, i32) {
    %c0_i32 = arith.constant 0 : i32
    %c0_i32_0 = arith.constant 0 : i32
    %c0_i32_1 = arith.constant 0 : i32
    return %c0_i32, %c0_i32_0 : i32, i32
  }
  func.func @transform_5(%arg0: i32) -> (i32, i32) {
    %c0_i32 = arith.constant 0 : i32
    %c0_i32_0 = arith.constant 0 : i32
    %c0_i32_1 = arith.constant 0 : i32
    return %c0_i32, %c0_i32_0 : i32, i32
  }
  func.func @transform_6(%arg0: i32) -> (i32, i32) {
    %c0_i32 = arith.constant 0 : i32
    %c0_i32_0 = arith.constant 0 : i32
    %c0_i32_1 = arith.constant 0 : i32
    return %c0_i32, %c0_i32_0 : i32, i32
  }
  func.func @transform_7(%arg0: i32) -> (i32, i32) {
    %c0_i32 = arith.constant 0 : i32
    %c0_i32_0 = arith.constant 0 : i32
    %c0_i32_1 = arith.constant 0 : i32
    return %c0_i32, %c0_i32_0 : i32, i32
  }
  func.func @transform_8(%arg0: i32) -> (i32, i32) {
    %c0_i32 = arith.constant 0 : i32
    %c0_i32_0 = arith.constant 0 : i32
    %c0_i32_1 = arith.constant 0 : i32
    return %c0_i32, %c0_i32_0 : i32, i32
  }
  func.func @transform_9(%arg0: i32) -> (i32, i32) {
    %c0_i32 = arith.constant 0 : i32
    %c0_i32_0 = arith.constant 0 : i32
    return %c0_i32, %arg0 : i32, i32
  }
}

</mosaic_0001>

<llo_original>
// kernel: gaussian_discriminator.1
$region0: #{gaussian_discriminator.1}
  #allocation0 [shape = 'u32[]', space=smem, size = 0x4, offset = 0x4, fixed_abs, tag = 'smem constant byte address 0x4 - core index']
  #allocation1 [shape = 'u32[72,128]{1,0:T(1,128)}', space=vmem, size = 0x9000, scoped, tag = 'internal scratch']
  #allocation2 [shape = 'f32[1,1]{1,0:T(1,128)S(1)}', space=vmem, size = 0x200, scoped, tag = 'scoped memory for gaussian_discriminator.1']
  %s0 = inlined_call_operand.vmem [shape: f32[2,128], index: 0, kind: input, shape index: {}]
  %s1 = inlined_call_operand.vmem [shape: f32[32,2], index: 1, kind: input, shape index: {}]
  %s2 = inlined_call_operand.vmem [shape: f32[32,1], index: 2, kind: input, shape index: {}]
  %s3 = inlined_call_operand.vmem [shape: f32[32,32], index: 3, kind: input, shape index: {}]
  %s4 = inlined_call_operand.vmem [shape: f32[32,1], index: 4, kind: input, shape index: {}]
  %s5 = inlined_call_operand.vmem [shape: f32[32,32], index: 5, kind: input, shape index: {}]
  %s6 = inlined_call_operand.vmem [shape: f32[32,1], index: 6, kind: input, shape index: {}]
  %s7 = inlined_call_operand.vmem [shape: f32[1,32], index: 7, kind: input, shape index: {}]
  %s8 = inlined_call_operand.<no memory space> [shape: f32[1,1], index: 8, kind: input, shape index: {}]
  %s9 = inlined_call_operand.vmem [shape: f32[1,128], index: 9, kind: output, shape index: {}]
  %s10 = sld [smem:[#allocation0]]
  $region46: #{gaussian_discriminator.1} parent=0
    _
  %s12 = ssub.s32 1, %s10
  %s13 = scalar_select 0, %s12, %s10
  %v14 = vstv %s8
  %15 = vst [vmem:[#allocation2] sm:$0x1] %v14
  // Predicated region
  $region2: #{gaussian_discriminator.1} parent=0 // pred_check
    _
  $region3: #{gaussian_discriminator.1} parent=0 // pred_check_branch
    %17 = sbr.rel (0) target = $region5
  $region4: #{gaussian_discriminator.1} parent=0 // pred_region
    _
  $region5: #{gaussian_discriminator.1} parent=0 // pred_fallthru
    _
  // Predicated region
  $region6: #{gaussian_discriminator.1} parent=0 // pred_check
    _
  $region7: #{gaussian_discriminator.1} parent=0 // pred_check_branch
    %19 = sbr.rel (0) target = $region9
  $region8: #{gaussian_discriminator.1} parent=0 // pred_region
    _
  $region9: #{gaussian_discriminator.1} parent=0 // pred_fallthru
    _
  // Predicated region
  $region10: #{gaussian_discriminator.1} parent=0 // pred_check
    _
  $region11: #{gaussian_discriminator.1} parent=0 // pred_check_branch
    %21 = sbr.rel (0) target = $region13
  $region12: #{gaussian_discriminator.1} parent=0 // pred_region
    _
  $region13: #{gaussian_discriminator.1} parent=0 // pred_fallthru
    _
  // Predicated region
  $region14: #{gaussian_discriminator.1} parent=0 // pred_check
    _
  $region15: #{gaussian_discriminator.1} parent=0 // pred_check_branch
    %23 = sbr.rel (0) target = $region17
  $region16: #{gaussian_discriminator.1} parent=0 // pred_region
    _
  $region17: #{gaussian_discriminator.1} parent=0 // pred_fallthru
    _
  // Predicated region
  $region18: #{gaussian_discriminator.1} parent=0 // pred_check
    _
  $region19: #{gaussian_discriminator.1} parent=0 // pred_check_branch
    %25 = sbr.rel (0) target = $region21
  $region20: #{gaussian_discriminator.1} parent=0 // pred_region
    _
  $region21: #{gaussian_discriminator.1} parent=0 // pred_fallthru
    _
  // Predicated region
  $region22: #{gaussian_discriminator.1} parent=0 // pred_check
    _
  $region23: #{gaussian_discriminator.1} parent=0 // pred_check_branch
    %27 = sbr.rel (0) target = $region25
  $region24: #{gaussian_discriminator.1} parent=0 // pred_region
    _
  $region25: #{gaussian_discriminator.1} parent=0 // pred_fallthru
    _
  // Predicated region
  $region26: #{gaussian_discriminator.1} parent=0 // pred_check
    _
  $region27: #{gaussian_discriminator.1} parent=0 // pred_check_branch
    %29 = sbr.rel (0) target = $region29
  $region28: #{gaussian_discriminator.1} parent=0 // pred_region
    _
  $region29: #{gaussian_discriminator.1} parent=0 // pred_fallthru
    _
  // Predicated region
  $region30: #{gaussian_discriminator.1} parent=0 // pred_check
    _
  $region31: #{gaussian_discriminator.1} parent=0 // pred_check_branch
    %31 = sbr.rel (0) target = $region33
  $region32: #{gaussian_discriminator.1} parent=0 // pred_region
    _
  $region33: #{gaussian_discriminator.1} parent=0 // pred_fallthru
    _
  // Predicated region
  $region34: #{gaussian_discriminator.1} parent=0 // pred_check
    _
  $region35: #{gaussian_discriminator.1} parent=0 // pred_check_branch
    %33 = sbr.rel (0) target = $region37
  $region36: #{gaussian_discriminator.1} parent=0 // pred_region
    _
  $region37: #{gaussian_discriminator.1} parent=0 // pred_fallthru
    _
  %v34 = vld [vmem:[%s0] sm:$0x3]
  %v35 = vld [vmem:[%s1] sm:$0xff]
  %v36 = vld [vmem:[%s1 + $0x8] sm:$0xff]
  %v37 = vld [vmem:[%s1 + $0x10] sm:$0xff]
  %v38 = vld [vmem:[%s1 + $0x18] sm:$0xff]
  %40 = vset.pattern.permute.xlu0 0
  %41 = vperm.xlu0 %40, %v35
  %v42 = vpop.permute.xlu0 %41
  %45 = vset.pattern.permute.xlu0 0
  %46 = vperm.xlu0 %45, %v36
  %v47 = vpop.permute.xlu0 %46
  %50 = vset.pattern.permute.xlu0 0
  %51 = vperm.xlu0 %50, %v37
  %v52 = vpop.permute.xlu0 %51
  %55 = vset.pattern.permute.xlu0 0
  %56 = vperm.xlu0 %55, %v38
  %v57 = vpop.permute.xlu0 %56
  %v59 = vperm.slane %v34, 0
  %v60 = vmul.f32 %v42, %v59
  %v61 = vmul.f32 %v47, %v59
  %v62 = vmul.f32 %v52, %v59
  %v63 = vmul.f32 %v57, %v59
  %64 = vset.pattern.permute.xlu0 1
  %65 = vperm.xlu0 %64, %v35
  %v66 = vpop.permute.xlu0 %65
  %68 = vset.pattern.permute.xlu0 1
  %69 = vperm.xlu0 %68, %v36
  %v70 = vpop.permute.xlu0 %69
  %72 = vset.pattern.permute.xlu0 1
  %73 = vperm.xlu0 %72, %v37
  %v74 = vpop.permute.xlu0 %73
  %76 = vset.pattern.permute.xlu0 1
  %77 = vperm.xlu0 %76, %v38
  %v78 = vpop.permute.xlu0 %77
  %v80 = vperm.slane %v34, 1
  %v81 = vmul.f32 %v66, %v80
  %v82 = vmul.f32 %v70, %v80
  %v83 = vmul.f32 %v74, %v80
  %v84 = vmul.f32 %v78, %v80
  %v85 = vadd.f32 %v60, %v81
  %v86 = vadd.f32 %v61, %v82
  %v87 = vadd.f32 %v62, %v83
  %v88 = vadd.f32 %v63, %v84
  %v89 = vld [vmem:[%s2] sm:$0xff]
  %v90 = vld [vmem:[%s2 + $0x8] sm:$0xff]
  %v91 = vld [vmem:[%s2 + $0x10] sm:$0xff]
  %v92 = vld [vmem:[%s2 + $0x18] sm:$0xff]
  %94 = vset.pattern.permute.xlu0 0
  %95 = vperm.xlu0 %94, %v89
  %v96 = vpop.permute.xlu0 %95
  %99 = vset.pattern.permute.xlu0 0
  %100 = vperm.xlu0 %99, %v90
  %v101 = vpop.permute.xlu0 %100
  %104 = vset.pattern.permute.xlu0 0
  %105 = vperm.xlu0 %104, %v91
  %v106 = vpop.permute.xlu0 %105
  %109 = vset.pattern.permute.xlu0 0
  %110 = vperm.xlu0 %109, %v92
  %v111 = vpop.permute.xlu0 %110
  %v113 = vadd.f32 %v85, %v96
  %v114 = vadd.f32 %v86, %v101
  %v115 = vadd.f32 %v87, %v106
  %v116 = vadd.f32 %v88, %v111
  %v117 = vmax.f32 %v113, 0.0
  %v118 = vmax.f32 %v114, 0.0
  %v119 = vmax.f32 %v115, 0.0
  %v120 = vmax.f32 %v116, 0.0
  %v121 = vld [vmem:[%s3] sm:$0xff]
  %v122 = vld [vmem:[%s3 + $0x8] sm:$0xff]
  %v123 = vld [vmem:[%s3 + $0x10] sm:$0xff]
  %v124 = vld [vmem:[%s3 + $0x18] sm:$0xff]
  %v125 = vld [vmem:[%s4] sm:$0xff]
  %v126 = vld [vmem:[%s4 + $0x8] sm:$0xff]
  %v127 = vld [vmem:[%s4 + $0x10] sm:$0xff]
  %v128 = vld [vmem:[%s4 + $0x18] sm:$0xff]
  %130 = vset.pattern.permute.xlu0 0
  %131 = vperm.xlu0 %130, %v125
  %v132 = vpop.permute.xlu0 %131
  %135 = vset.pattern.permute.xlu0 0
  %136 = vperm.xlu0 %135, %v126
  %v137 = vpop.permute.xlu0 %136
  %140 = vset.pattern.permute.xlu0 0
  %141 = vperm.xlu0 %140, %v127
  %v142 = vpop.permute.xlu0 %141
  %145 = vset.pattern.permute.xlu0 0
  %146 = vperm.xlu0 %145, %v128
  %v147 = vpop.permute.xlu0 %146
  %vm149 = vcmask 261120
  %v151 = vsel %vm149, %v121, 0
  %v154 = vsel %vm149, %v122, 0
  %v157 = vsel %vm149, %v123, 0
  %v160 = vsel %vm149, %v124, 0
  %162 = vmatpush.msra.mxu0 0.0
  %163 = vmatpush.msra.mxu0 0.0
  %164 = vmatpush.msra.mxu0 0.0
  %165 = vmatpush.msra.mxu0 0.0
  %166 = vmatpush.msra.mxu0 0.0
  %167 = vmatpush.msra.mxu0 0.0
  %168 = vmatpush.msra.mxu0 0.0
  %169 = vmatpush.msra.mxu0 0.0
  %170 = vmatpush.msra.mxu0 0.0
  %171 = vmatpush.msra.mxu0 0.0
  %172 = vmatpush.msra.mxu0 0.0
  %173 = vmatpush.msra.mxu0 0.0
  %174 = vmatpush.msra.mxu0 %v120
  %175 = vmatpush.msra.mxu0 %v119
  %176 = vmatpush.msra.mxu0 %v118
  %177 = vmatpush.msra.mxu0 %v117
  %178 = vmatmul.f32.gmra.mxu0 %v151
  %v179 = vpop.f32.mrf.mxu0
  %v180 = vadd.f32 %v132, %v179
  %181 = vmatmul.f32.gmra.mxu0 %v154
  %v182 = vpop.f32.mrf.mxu0
  %v183 = vadd.f32 %v137, %v182
  %184 = vmatmul.f32.gmra.mxu0 %v157
  %v185 = vpop.f32.mrf.mxu0
  %v186 = vadd.f32 %v142, %v185
  %187 = vmatmul.f32.gmra.mxu0 %v160
  %v188 = vpop.f32.mrf.mxu0
  %v189 = vadd.f32 %v147, %v188
  %190 = vdwg.mxu0
  %v191 = vmax.f32 %v180, 0.0
  %v192 = vmax.f32 %v183, 0.0
  %v193 = vmax.f32 %v186, 0.0
  %v194 = vmax.f32 %v189, 0.0
  %v195 = vld [vmem:[%s5] sm:$0xff]
  %v196 = vld [vmem:[%s5 + $0x8] sm:$0xff]
  %v197 = vld [vmem:[%s5 + $0x10] sm:$0xff]
  %v198 = vld [vmem:[%s5 + $0x18] sm:$0xff]
  %v199 = vld [vmem:[%s6] sm:$0xff]
  %v200 = vld [vmem:[%s6 + $0x8] sm:$0xff]
  %v201 = vld [vmem:[%s6 + $0x10] sm:$0xff]
  %v202 = vld [vmem:[%s6 + $0x18] sm:$0xff]
  %204 = vset.pattern.permute.xlu0 0
  %205 = vperm.xlu0 %204, %v199
  %v206 = vpop.permute.xlu0 %205
  %209 = vset.pattern.permute.xlu0 0
  %210 = vperm.xlu0 %209, %v200
  %v211 = vpop.permute.xlu0 %210
  %214 = vset.pattern.permute.xlu0 0
  %215 = vperm.xlu0 %214, %v201
  %v216 = vpop.permute.xlu0 %215
  %219 = vset.pattern.permute.xlu0 0
  %220 = vperm.xlu0 %219, %v202
  %v221 = vpop.permute.xlu0 %220
  %v224 = vsel %vm149, %v195, 0
  %v227 = vsel %vm149, %v196, 0
  %v230 = vsel %vm149, %v197, 0
  %v233 = vsel %vm149, %v198, 0
  %235 = vmatpush.msra.mxu0 0.0
  %236 = vmatpush.msra.mxu0 0.0
  %237 = vmatpush.msra.mxu0 0.0
  %238 = vmatpush.msra.mxu0 0.0
  %239 = vmatpush.msra.mxu0 0.0
  %240 = vmatpush.msra.mxu0 0.0
  %241 = vmatpush.msra.mxu0 0.0
  %242 = vmatpush.msra.mxu0 0.0
  %243 = vmatpush.msra.mxu0 0.0
  %244 = vmatpush.msra.mxu0 0.0
  %245 = vmatpush.msra.mxu0 0.0
  %246 = vmatpush.msra.mxu0 0.0
  %247 = vmatpush.msra.mxu0 %v194
  %248 = vmatpush.msra.mxu0 %v193
  %249 = vmatpush.msra.mxu0 %v192
  %250 = vmatpush.msra.mxu0 %v191
  %251 = vmatmul.f32.gmra.mxu0 %v224
  %v252 = vpop.f32.mrf.mxu0
  %v253 = vadd.f32 %v206, %v252
  %254 = vmatmul.f32.gmra.mxu0 %v227
  %v255 = vpop.f32.mrf.mxu0
  %v256 = vadd.f32 %v211, %v255
  %257 = vmatmul.f32.gmra.mxu0 %v230
  %v258 = vpop.f32.mrf.mxu0
  %v259 = vadd.f32 %v216, %v258
  %260 = vmatmul.f32.gmra.mxu0 %v233
  %v261 = vpop.f32.mrf.mxu0
  %v262 = vadd.f32 %v221, %v261
  %263 = vdwg.mxu0
  %v264 = vmax.f32 %v253, 0.0
  %v265 = vmax.f32 %v256, 0.0
  %v266 = vmax.f32 %v259, 0.0
  %v267 = vmax.f32 %v262, 0.0
  %v268 = vld [vmem:[%s7] sm:$0x1]
  %v269 = vld [vmem:[#allocation2] sm:$0x1]
  %271 = vset.pattern.permute.xlu0 0
  %272 = vperm.xlu0 %271, %v269
  %v273 = vpop.permute.xlu0 %272
  %v275 = vperm.slane %v273, 0
  %v277 = vsel %vm149, %v268, 0
  %279 = vmatpush.msra.mxu0 0.0
  %280 = vmatpush.msra.mxu0 0.0
  %281 = vmatpush.msra.mxu0 0.0
  %282 = vmatpush.msra.mxu0 0.0
  %283 = vmatpush.msra.mxu0 0.0
  %284 = vmatpush.msra.mxu0 0.0
  %285 = vmatpush.msra.mxu0 0.0
  %286 = vmatpush.msra.mxu0 0.0
  %287 = vmatpush.msra.mxu0 0.0
  %288 = vmatpush.msra.mxu0 0.0
  %289 = vmatpush.msra.mxu0 0.0
  %290 = vmatpush.msra.mxu0 0.0
  %291 = vmatpush.msra.mxu0 %v267
  %292 = vmatpush.msra.mxu0 %v266
  %293 = vmatpush.msra.mxu0 %v265
  %294 = vmatpush.msra.mxu0 %v264
  %295 = vmatmul.f32.gmra.mxu0 %v277
  %v296 = vpop.f32.mrf.mxu0
  %v297 = vadd.f32 %v275, %v296
  %298 = vdwg.mxu0
  %v299 = vsub.f32 0.0, %v297
  %v300 = vmul.f32 %v299, 1.442695
  %v301 = vpow.pop %v300
  %v302 = vadd.f32 %v301, 1.0
  %v303 = vrcp.pop %v302
  %v304 = vmul.f32 %v302, %v303
  %v305 = vsub.f32 1.0, %v304
  %v306 = vmul.f32 %v303, %v305
  %v307 = vadd.f32 %v303, %v306
  %vm308 = vweird.f32 %v302
  %vm309 = vweird.f32 %v303
  %vm310 = vmor %vm308, %vm309
  %v311 = vsel %vm310, %v303, %v307
  %v312 = vand.u32 2147483647, %v302
  %vm313 = vcmp.eq.f32.partialorder %v312, 8.507059e+37
  %v314 = vand.u32 %v302, 2147483648
  %v315 = vor.u32 1.1754944e-38, %v314
  %v316 = vsel %vm313, %v315, %v311
  %v317 = vmul.f32 1.0, %v316
  %318 = vst [vmem:[%s9] sm:$0x1] %v317
  // Predicated region
  $region38: #{gaussian_discriminator.1} parent=0 // pred_check
    _
  $region39: #{gaussian_discriminator.1} parent=0 // pred_check_branch
    %320 = sbr.rel (0) target = $region41
  $region40: #{gaussian_discriminator.1} parent=0 // pred_region
    _
  $region41: #{gaussian_discriminator.1} parent=0 // pred_fallthru
    _
  // Predicated region
  $region42: #{gaussian_discriminator.1} parent=0 // pred_check
    _
  $region43: #{gaussian_discriminator.1} parent=0 // pred_check_branch
    %322 = sbr.rel (0) target = $region45
  $region44: #{gaussian_discriminator.1} parent=0 // pred_region
    _
  $region45: #{gaussian_discriminator.1} parent=0 // pred_fallthru
    _

</llo_original>
